<compile_context>
chip_gen: v7x
topology: tpu7x:2x2x1
jax: 0.10.0
libtpu: 0.0.40
codegen_flags: <defaults>
</compile_context>

<pallas_src>
import jax
import jax.numpy as jnp
from jax.experimental import pallas as pl
from jax.experimental.pallas import tpu as pltpu


# -----------------------------------------------------------------------------
# Kernels
# -----------------------------------------------------------------------------
def _self_mm_rows_kernel(x_ref, o_ref):
    """Small/mid path.

    x is passed once; its BlockSpec index_map is constant so the full matrix
    is DMA'd into VMEM exactly once and stays resident.  Each grid step
    multiplies a row-slab of x against the resident matrix.
    """
    tm = o_ref.shape[0]
    start = pl.multiple_of(pl.program_id(0) * tm, tm)
    lhs = x_ref[pl.ds(start, tm), :]
    o_ref[...] = jnp.dot(
        lhs, x_ref[...], preferred_element_type=jnp.float32
    ).astype(o_ref.dtype)


def _mm_tiled_kernel(a_ref, b_ref, o_ref, acc_ref):
    """Large path: tiled matmul, f32 scratch accumulator (P3 pattern)."""

    @pl.when(pl.program_id(2) == 0)
    def _():
        acc_ref[...] = jnp.zeros_like(acc_ref)

    acc_ref[...] += jnp.dot(
        a_ref[...], b_ref[...], preferred_element_type=jnp.float32
    )

    @pl.when(pl.program_id(2) == pl.num_programs(2) - 1)
    def _():
        o_ref[...] = acc_ref[...].astype(o_ref.dtype)


# -----------------------------------------------------------------------------
# Helpers
# -----------------------------------------------------------------------------
def _vmem_limit_bytes() -> int:
    """Half of physical VMEM: ~64 MiB on v5e/v6e (128 MiB), ~32 MiB on v7x."""
    try:
        cap = int(pltpu.get_tpu_info().vmem_capacity_bytes)
        return max(32 * 1024 * 1024, min(cap // 2, 96 * 1024 * 1024))
    except Exception:
        return 32 * 1024 * 1024  # conservative: safe on every generation


def _row_tile(M: int) -> int:
    """Largest row-slab tile (multiple of 8, <=256) dividing M with >=2 steps."""
    start = min(256, (M // 2) // 8 * 8)
    for t in range(start, 7, -8):
        if M % t == 0:
            return t
    return M  # single-step fallback


def _pick_tiles(M: int):
    """Return (tm, tn, tk, padded_size) for the tiled path."""
    if M % 1024 == 0:
        return 512, 1024, 512, M          # ~170 FLOP/byte, no padding
    if M % 512 == 0:
        return 512, 512, 512, M           # 128 FLOP/byte, no padding
    if M % 256 == 0:
        return 256, 256, 256, M           # no padding
    Sp = pl.cdiv(M, 512) * 512            # zero-pad (exact for matmul)
    return 512, 512, 512, Sp


# -----------------------------------------------------------------------------
# Wrapper
# -----------------------------------------------------------------------------
def self_matmul(x, *, force_tiled: bool = False, cast_to_bf16: bool = False):
    """Computes x @ x (the forward pass torch.mm(inp, inp)) on TPU via Pallas."""
    M, K = x.shape
    assert M == K, "torch.mm(inp, inp) requires a square matrix"
    out_dtype = x.dtype

    # Optional bf16 fast path (MXU-native, halves HBM reads); accumulation and
    # output stay float32-exact.
    xc = x.astype(jnp.bfloat16) if cast_to_bf16 else x
    in_itemsize = jnp.dtype(xc.dtype).itemsize
    out_itemsize = jnp.dtype(out_dtype).itemsize

    vmem_limit = _vmem_limit_bytes()
    cost = pl.CostEstimate(
        flops=2 * M * M * K,
        transcendentals=0,
        bytes_accessed=M * K * in_itemsize + M * M * out_itemsize,
    )

    # ---- Small / mid path: x loaded once, grid over output row slabs --------
    tm_small = _row_tile(M)
    # Conservative: input possibly double-buffered + double-buffered out tiles.
    small_need = (2 * M * K) * in_itemsize + (2 * tm_small * M) * out_itemsize
    small_budget = min(int(0.7 * vmem_limit), 48 * 1024 * 1024)
    if not force_tiled and small_need <= small_budget:
        return pl.pallas_call(
            _self_mm_rows_kernel,
            out_shape=jax.ShapeDtypeStruct((M, M), out_dtype),
            grid=(M // tm_small,),
            in_specs=[pl.BlockSpec((M, K), lambda i: (0, 0))],
            out_specs=pl.BlockSpec((tm_small, M), lambda i: (i, 0)),
            cost_estimate=cost,
            compiler_params=pltpu.CompilerParams(
                dimension_semantics=("parallel",),
                vmem_limit_bytes=vmem_limit,
            ),
        )(xc)

    # ---- Large path: tiled matmul ------------------------------------------
    tm, tn, tk, Sp = _pick_tiles(M)
    xp = xc if Sp == M else jnp.pad(xc, ((0, Sp - M), (0, Sp - M)))
    grid = (Sp // tm, Sp // tn, Sp // tk)

    out_p = pl.pallas_call(
        _mm_tiled_kernel,
        out_shape=jax.ShapeDtypeStruct((Sp, Sp), out_dtype),
        grid=grid,
        in_specs=[
            pl.BlockSpec((tm, tk), lambda i, j, k: (i, k)),  # LHS tile
            pl.BlockSpec((tk, tn), lambda i, j, k: (k, j)),  # RHS tile
        ],
        out_specs=pl.BlockSpec((tm, tn), lambda i, j, k: (i, j)),
        scratch_shapes=[pltpu.VMEM((tm, tn), jnp.float32)],
        cost_estimate=cost,
        compiler_params=pltpu.CompilerParams(
            dimension_semantics=("parallel", "parallel", "arbitrary"),
            vmem_limit_bytes=vmem_limit,
        ),
    )(xp, xp)

    return out_p if Sp == M else out_p[:M, :M]


# -----------------------------------------------------------------------------
# Test
# -----------------------------------------------------------------------------
def _check(out, x, tol=1e-3):
    ref = jnp.dot(x, x, precision=jax.lax.Precision.HIGHEST)
    assert out.shape == ref.shape, (out.shape, ref.shape)
    err = float(jnp.max(jnp.abs(out - ref)) / (jnp.max(jnp.abs(ref)) + 1e-6))
    assert err < tol, f"relative-to-max error too large: {err}"


if __name__ == "__main__":
    key = jax.random.PRNGKey(0)

    # Small square input consistent with torch.mm(inp, inp): small path.
    x = jax.random.normal(key, (256, 256), dtype=jnp.float32)
    out = self_matmul(x)
    jax.block_until_ready(out)
    _check(out, x)

    # Non-128-multiple square size (shape flexibility; still the small path).
    x2 = jax.random.normal(jax.random.PRNGKey(1), (200, 200), dtype=jnp.float32)
    out2 = self_matmul(x2)
    jax.block_until_ready(out2)
    _check(out2, x2)

    # Exercise the tiled path (no padding) on a modest size.
    x3 = jax.random.normal(jax.random.PRNGKey(2), (1024, 1024), dtype=jnp.float32)
    out3 = self_matmul(x3, force_tiled=True)
    jax.block_until_ready(out3)
    _check(out3, x3)

    # Exercise the tiled path with zero-padding (640 -> 1024).
    x4 = jax.random.normal(jax.random.PRNGKey(3), (640, 640), dtype=jnp.float32)
    out4 = self_matmul(x4, force_tiled=True)
    jax.block_until_ready(out4)
    _check(out4, x4)

    print("KERNEL_OK")
</pallas_src>

<mosaic_0001>
module attributes {stable_mosaic.version = 11 : i64} {
  func.func @_self_mm_rows_kernel(%arg0: i32, %arg1: memref<256x256xf32, #tpu.memory_space<vmem>>, %arg2: memref<128x256xf32, #tpu.memory_space<vmem>>) attributes {dimension_semantics = [#tpu.dimension_semantics<parallel>], iteration_bounds = array<i64: 2>, scalar_prefetch = 0 : i64, scratch_operands = 0 : i64, tpu.core_type = #tpu.core_type<tc>, window_params = [{pipeline_mode = #tpu.pipeline_mode<synchronous>, transform_indices = @transform_0, window_bounds = array<i64: 256, 256>}, {transform_indices = @transform_1, window_bounds = array<i64: 128, 256>}]} {
    %c128_i32 = arith.constant 128 : i32
    %0 = arith.muli %arg0, %c128_i32 : i32
    %1 = tpu.assume_multiple %0, 128 : i32
    %2 = arith.index_cast %1 : i32 to index
    %c0 = arith.constant 0 : index
    %3 = vector.load %arg1[%2, %c0] : memref<256x256xf32, #tpu.memory_space<vmem>>, vector<128x256xf32>
    %c0_0 = arith.constant 0 : index
    %c0_1 = arith.constant 0 : index
    %4 = vector.load %arg1[%c0_0, %c0_1] : memref<256x256xf32, #tpu.memory_space<vmem>>, vector<256x256xf32>
    %cst = arith.constant dense<0.000000e+00> : vector<128x256xf32>
    %5 = tpu.matmul %3, %4, %cst {dimension_numbers = #tpu.dot_dimension_numbers<[1], [0], [0], [1], [0, 0, 1, 1], [], []>} : vector<128x256xf32>, vector<256x256xf32>, vector<128x256xf32> -> vector<128x256xf32>
    %c0_2 = arith.constant 0 : index
    %c0_3 = arith.constant 0 : index
    %6 = vector.load %arg2[%c0_2, %c0_3] : memref<128x256xf32, #tpu.memory_space<vmem>>, vector<128x256xf32>
    tpu.vector_store %arg2[%c0_2, %c0_3], %5 {strides = array<i32>} : memref<128x256xf32, #tpu.memory_space<vmem>>, vector<128x256xf32>,
    return
  }
  func.func @transform_0(%arg0: i32) -> (i32, i32) {
    %c0_i32 = arith.constant 0 : i32
    %c0_i32_0 = arith.constant 0 : i32
    %c0_i32_1 = arith.constant 0 : i32
    return %c0_i32, %c0_i32_0 : i32, i32
  }
  func.func @transform_1(%arg0: i32) -> (i32, i32) {
    %c0_i32 = arith.constant 0 : i32
    %c0_i32_0 = arith.constant 0 : i32
    return %arg0, %c0_i32 : i32, i32
  }
}

</mosaic_0001>

<llo_original>
// kernel: tpu_custom_call.1
$region0: #{tpu_custom_call.1}
  #allocation0 [shape = 'u32[]', space=smem, size = 0x4, offset = 0x4, fixed_abs, tag = 'smem constant byte address 0x4 - core index']
  #allocation1 [shape = 'u32[144,128]{1,0:T(1,128)}', space=vmem, size = 0x12000, scoped, tag = 'internal scratch']
  %s0 = inlined_call_operand.hbm [shape: f32[256,256], index: 0, kind: input, shape index: {}]
  %s1 = inlined_call_operand.hbm [shape: f32[256,256], index: 1, kind: output, shape index: {}]
  %s2 = sld [smem:[#allocation0]]
  $region41: #{tpu_custom_call.1} parent=0
    _
  %s4 = ssub.s32 1, %s2
  %s5 = scalar_select 0, %s4, %s2
  $region1: #{tpu_custom_call.1} parent=0
    #allocation2 [shape = 'u8[262144]{0}', space=vmem, size = 0x40000, scoped, tag = 'input window, operand 0, single buffered']
    #allocation3 [shape = 's32[2]{0}', space=sflag, size = 0x8, scoped, tag = 'scoped memory for tpu_custom_call.1']
    #allocation4 [shape = 's32[2]{0}', space=sflag, size = 0x8, scoped, tag = 'scoped memory for tpu_custom_call.1']
    #allocation5 [shape = 'u8[262144]{0}', space=vmem, size = 0x40000, scoped, tag = 'output window, operand 0']
    %6 = vsyncpa [#allocation3], 0
    %7 = vsyncpa [#allocation4], 0
    %s8 = scalar_lea.sflag [#allocation4], 1
    %9 = vsyncpa %s8, 0
    loop: start=0, step=1, limit=4
    $region2: #{tpu_custom_call.1} parent=1 // loop_pre_header
      _
    $region3: #{tpu_custom_call.1} parent=1 // loop_header
      %s11 = sphi 0, %s15
      %p12 = scmp.ge.s32.totalorder %s11, 4
      %s19 = sphi 0, %s19
      %s21 = sphi 0, %s19
      %s22 = sphi 0, %s21
      %s36 = sphi 0, %s22
      %s42 = sphi 0, %s44
      %s45 = sphi 0, %s42
      %s46 = sphi 0, %s45
      %s62 = sphi 0, %s46
    $region4: #{tpu_custom_call.1} parent=1 // loop_header_branch
      %14 = sbr.rel (%p12) target = $region8
    $region5: #{tpu_custom_call.1} parent=1 // loop_body
      %s16 = ssub.s32 %s11, 1
      %s17 = ssub.s32 %s11, 2
      %s18 = sadd.s32 %s11, 1
      %s20 = sadd.s32 %s19, 1
      %p23 = scmp.eq.s32.totalorder %s11, 1
      %p24 = scmp.ne.s32.totalorder %s19, %s21
      %p25 = scmp.eq.s32.totalorder %s11, 0
      %p26 = por %p24, %p25
      %p27 = scmp.ne.s32.totalorder %s19, %s21
      %p28 = scmp.eq.s32.totalorder %s16, 1
      %p29 = por %p27, %p28
      %p30 = scmp.ne.s32.totalorder %s21, %s22
      %p31 = scmp.eq.s32.totalorder %s16, 0
      %p32 = por %p30, %p31
      %p33 = scmp.ne.s32.totalorder %s21, %s22
      %p34 = scmp.eq.s32.totalorder %s17, 1
      %p35 = por %p33, %p34
      %p37 = scmp.ne.s32.totalorder %s22, %s36
      %p38 = scmp.eq.s32.totalorder %s17, 0
      %p39 = por %p37, %p38
      %s40 = ssub.s32 %s11, %s18
      %p41 = scmp.eq.s32.totalorder %s40, 0
      %s43 = sadd.s32 %s42, 1
      %s44 = scalar_select %p41, %s42, %s43
      %p47 = pneg %p41
      %p48 = scmp.eq.s32.totalorder %s11, 1
      %p49 = por %p47, %p48
      %p50 = scmp.ne.s32.totalorder %s42, %s45
      %p51 = scmp.eq.s32.totalorder %s11, 0
      %p52 = por %p50, %p51
      %p53 = scmp.ne.s32.totalorder %s42, %s45
      %p54 = scmp.eq.s32.totalorder %s16, 1
      %p55 = por %p53, %p54
      %p56 = scmp.ne.s32.totalorder %s45, %s46
      %p57 = scmp.eq.s32.totalorder %s16, 0
      %p58 = por %p56, %p57
      %p59 = scmp.ne.s32.totalorder %s45, %s46
      %p60 = scmp.eq.s32.totalorder %s17, 1
      %p61 = por %p59, %p60
      %p63 = scmp.ne.s32.totalorder %s46, %s62
      %p64 = scmp.eq.s32.totalorder %s17, 0
      %p65 = por %p63, %p64
      %p66 = scmp.le.s32.totalorder 1, %s11
      %p67 = scmp.lt.s32.totalorder %s11, 3
      %p68 = pnand %p66, %p67
      %p69 = pneg %p68
      // Predicated region
      $region9: #{tpu_custom_call.1} parent=5 // pred_check
        _
      $region10: #{tpu_custom_call.1} parent=5 // pred_check_branch
        %71 = sbr.rel (%p68) target = $region12
      $region11: #{tpu_custom_call.1} parent=5 // pred_region
        %s72 = ssub.s32 %s11, 1
        // Predicated region
        $region13: #{tpu_custom_call.1} parent=11 // pred_check
          %p73 = pneg %p32
        $region14: #{tpu_custom_call.1} parent=11 // pred_check_branch
          %75 = sbr.rel (%p73) target = $region16
        $region15: #{tpu_custom_call.1} parent=11 // pred_region
          %s77 = ssub.s32 8192, 8192
          %78 = vsyncadd [#allocation3], %s77
          %s79 = sshll.u32 [#allocation2], 4
          %s80 = int_to_ptr.vmem [resolvable:$true] %s79
          %85 = dma.hbm_to_vmem [thread:$0]  %s0, 8192, %s80, [#allocation3], 256, 256, 16
        $region16: #{tpu_custom_call.1} parent=11 // pred_fallthru
          _
      $region12: #{tpu_custom_call.1} parent=5 // pred_fallthru
        _
      %p86 = scmp.lt.s32.totalorder %s11, 2
      // Predicated region
      $region17: #{tpu_custom_call.1} parent=5 // pred_check
        %p87 = pneg %p86
      $region18: #{tpu_custom_call.1} parent=5 // pred_check_branch
        %89 = sbr.rel (%p87) target = $region20
      $region19: #{tpu_custom_call.1} parent=5 // pred_region
        _
      $region20: #{tpu_custom_call.1} parent=5 // pred_fallthru
        _
      %p90 = scmp.le.s32.totalorder 1, %s11
      %p91 = scmp.lt.s32.totalorder %s11, 3
      %p92 = pnand %p90, %p91
      %p93 = pneg %p92
      // Predicated region
      $region21: #{tpu_custom_call.1} parent=5 // pred_check
        _
      $region22: #{tpu_custom_call.1} parent=5 // pred_check_branch
        %95 = sbr.rel (%p92) target = $region24
      $region23: #{tpu_custom_call.1} parent=5 // pred_region
        %s96 = ssub.s32 %s11, 1
        // Predicated region
        $region25: #{tpu_custom_call.1} parent=23 // pred_check
          %p97 = pneg %p32
        $region26: #{tpu_custom_call.1} parent=23 // pred_check_branch
          %99 = sbr.rel (%p97) target = $region28
        $region27: #{tpu_custom_call.1} parent=23 // pred_region
          %100 = dma.done [#allocation3], 8192
        $region28: #{tpu_custom_call.1} parent=23 // pred_fallthru
          _
        %p101 = pneg %p32
        %p102 = pneg %p29
        %p103 = pneg %p58
        %p104 = pneg %p55
        %s105 = sand.u32 %s45, 1
        %s106 = scalar_lea.sflag [#allocation4], %s105
        %s107 = sand.u32 %s45, 1
        %s108 = smul.addr %s107, 256
        %s109 = scalar_lea.vmem [#allocation5], %s108
        %s110 = smul.u32 16, %s16
        %s111 = smul.u32 %s16, 128
        %s112 = sshra.s32 %s111, 3
        %s113 = sand.u32 %s111, 7
        %s114 = smul.u32 %s112, 2
        %s115 = smul.addr %s114, 8
        %s116 = scalar_lea.vmem [#allocation2], %s115
        %v117 = vld [vmem:[%s116] sm:$0xff]
        %v118 = vld [vmem:[%s116 + $0x8] sm:$0xff]
        %v119 = vld [vmem:[%s116 + $0x10] sm:$0xff]
        %v120 = vld [vmem:[%s116 + $0x18] sm:$0xff]
        %v121 = vld [vmem:[%s116 + $0x20] sm:$0xff]
        %v122 = vld [vmem:[%s116 + $0x28] sm:$0xff]
        %v123 = vld [vmem:[%s116 + $0x30] sm:$0xff]
        %v124 = vld [vmem:[%s116 + $0x38] sm:$0xff]
        %v125 = vld [vmem:[%s116 + $0x40] sm:$0xff]
        %v126 = vld [vmem:[%s116 + $0x48] sm:$0xff]
        %v127 = vld [vmem:[%s116 + $0x50] sm:$0xff]
        %v128 = vld [vmem:[%s116 + $0x58] sm:$0xff]
        %v129 = vld [vmem:[%s116 + $0x60] sm:$0xff]
        %v130 = vld [vmem:[%s116 + $0x68] sm:$0xff]
        %v131 = vld [vmem:[%s116 + $0x70] sm:$0xff]
        %v132 = vld [vmem:[%s116 + $0x78] sm:$0xff]
        %v133 = vld [vmem:[%s116 + $0x80] sm:$0xff]
        %v134 = vld [vmem:[%s116 + $0x88] sm:$0xff]
        %v135 = vld [vmem:[%s116 + $0x90] sm:$0xff]
        %v136 = vld [vmem:[%s116 + $0x98] sm:$0xff]
        %v137 = vld [vmem:[%s116 + $0xa0] sm:$0xff]
        %v138 = vld [vmem:[%s116 + $0xa8] sm:$0xff]
        %v139 = vld [vmem:[%s116 + $0xb0] sm:$0xff]
        %v140 = vld [vmem:[%s116 + $0xb8] sm:$0xff]
        %v141 = vld [vmem:[%s116 + $0xc0] sm:$0xff]
        %v142 = vld [vmem:[%s116 + $0xc8] sm:$0xff]
        %v143 = vld [vmem:[%s116 + $0xd0] sm:$0xff]
        %v144 = vld [vmem:[%s116 + $0xd8] sm:$0xff]
        %v145 = vld [vmem:[%s116 + $0xe0] sm:$0xff]
        %v146 = vld [vmem:[%s116 + $0xe8] sm:$0xff]
        %v147 = vld [vmem:[%s116 + $0xf0] sm:$0xff]
        %v148 = vld [vmem:[%s116 + $0xf8] sm:$0xff]
        %v149 = vld [vmem:[#allocation2] sm:$0xff]
        %v150 = vld [vmem:[#allocation2 + $0x8] sm:$0xff]
        %v151 = vld [vmem:[#allocation2 + $0x10] sm:$0xff]
        %v152 = vld [vmem:[#allocation2 + $0x18] sm:$0xff]
        %v153 = vld [vmem:[#allocation2 + $0x20] sm:$0xff]
        %v154 = vld [vmem:[#allocation2 + $0x28] sm:$0xff]
        %v155 = vld [vmem:[#allocation2 + $0x30] sm:$0xff]
        %v156 = vld [vmem:[#allocation2 + $0x38] sm:$0xff]
        %v157 = vld [vmem:[#allocation2 + $0x40] sm:$0xff]
        %v158 = vld [vmem:[#allocation2 + $0x48] sm:$0xff]
        %v159 = vld [vmem:[#allocation2 + $0x50] sm:$0xff]
        %v160 = vld [vmem:[#allocation2 + $0x58] sm:$0xff]
        %v161 = vld [vmem:[#allocation2 + $0x60] sm:$0xff]
        %v162 = vld [vmem:[#allocation2 + $0x68] sm:$0xff]
        %v163 = vld [vmem:[#allocation2 + $0x70] sm:$0xff]
        %v164 = vld [vmem:[#allocation2 + $0x78] sm:$0xff]
        %v165 = vld [vmem:[#allocation2 + $0x80] sm:$0xff]
        %v166 = vld [vmem:[#allocation2 + $0x88] sm:$0xff]
        %v167 = vld [vmem:[#allocation2 + $0x90] sm:$0xff]
        %v168 = vld [vmem:[#allocation2 + $0x98] sm:$0xff]
        %v169 = vld [vmem:[#allocation2 + $0xa0] sm:$0xff]
        %v170 = vld [vmem:[#allocation2 + $0xa8] sm:$0xff]
        %v171 = vld [vmem:[#allocation2 + $0xb0] sm:$0xff]
        %v172 = vld [vmem:[#allocation2 + $0xb8] sm:$0xff]
        %v173 = vld [vmem:[#allocation2 + $0xc0] sm:$0xff]
        %v174 = vld [vmem:[#allocation2 + $0xc8] sm:$0xff]
        %v175 = vld [vmem:[#allocation2 + $0xd0] sm:$0xff]
        %v176 = vld [vmem:[#allocation2 + $0xd8] sm:$0xff]
        %v177 = vld [vmem:[#allocation2 + $0xe0] sm:$0xff]
        %v178 = vld [vmem:[#allocation2 + $0xe8] sm:$0xff]
        %v179 = vld [vmem:[#allocation2 + $0xf0] sm:$0xff]
        %v180 = vld [vmem:[#allocation2 + $0xf8] sm:$0xff]
        %v181 = vld [vmem:[#allocation2 + $0x100] sm:$0xff]
        %v182 = vld [vmem:[#allocation2 + $0x108] sm:$0xff]
        %v183 = vld [vmem:[#allocation2 + $0x110] sm:$0xff]
        %v184 = vld [vmem:[#allocation2 + $0x118] sm:$0xff]
        %v185 = vld [vmem:[#allocation2 + $0x120] sm:$0xff]
        %v186 = vld [vmem:[#allocation2 + $0x128] sm:$0xff]
        %v187 = vld [vmem:[#allocation2 + $0x130] sm:$0xff]
        %v188 = vld [vmem:[#allocation2 + $0x138] sm:$0xff]
        %v189 = vld [vmem:[#allocation2 + $0x140] sm:$0xff]
        %v190 = vld [vmem:[#allocation2 + $0x148] sm:$0xff]
        %v191 = vld [vmem:[#allocation2 + $0x150] sm:$0xff]
        %v192 = vld [vmem:[#allocation2 + $0x158] sm:$0xff]
        %v193 = vld [vmem:[#allocation2 + $0x160] sm:$0xff]
        %v194 = vld [vmem:[#allocation2 + $0x168] sm:$0xff]
        %v195 = vld [vmem:[#allocation2 + $0x170] sm:$0xff]
        %v196 = vld [vmem:[#allocation2 + $0x178] sm:$0xff]
        %v197 = vld [vmem:[#allocation2 + $0x180] sm:$0xff]
        %v198 = vld [vmem:[#allocation2 + $0x188] sm:$0xff]
        %v199 = vld [vmem:[#allocation2 + $0x190] sm:$0xff]
        %v200 = vld [vmem:[#allocation2 + $0x198] sm:$0xff]
        %v201 = vld [vmem:[#allocation2 + $0x1a0] sm:$0xff]
        %v202 = vld [vmem:[#allocation2 + $0x1a8] sm:$0xff]
        %v203 = vld [vmem:[#allocation2 + $0x1b0] sm:$0xff]
        %v204 = vld [vmem:[#allocation2 + $0x1b8] sm:$0xff]
        %v205 = vld [vmem:[#allocation2 + $0x1c0] sm:$0xff]
        %v206 = vld [vmem:[#allocation2 + $0x1c8] sm:$0xff]
        %v207 = vld [vmem:[#allocation2 + $0x1d0] sm:$0xff]
        %v208 = vld [vmem:[#allocation2 + $0x1d8] sm:$0xff]
        %v209 = vld [vmem:[#allocation2 + $0x1e0] sm:$0xff]
        %v210 = vld [vmem:[#allocation2 + $0x1e8] sm:$0xff]
        %v211 = vld [vmem:[#allocation2 + $0x1f0] sm:$0xff]
        %v212 = vld [vmem:[#allocation2 + $0x1f8] sm:$0xff]
        %213 = vmatprep.subr.mxu0 %v150
        %214 = vmatpush1.msra.mxu0 %v149
        %215 = vmatprep.subr.mxu0 %v152
        %216 = vmatpush1.msra.mxu0 %v151
        %217 = vmatprep.subr.mxu0 %v154
        %218 = vmatpush1.msra.mxu0 %v153
        %219 = vmatprep.subr.mxu0 %v156
        %220 = vmatpush1.msra.mxu0 %v155
        %221 = vmatprep.subr.mxu0 %v158
        %222 = vmatpush1.msra.mxu0 %v157
        %223 = vmatprep.subr.mxu0 %v160
        %224 = vmatpush1.msra.mxu0 %v159
        %225 = vmatprep.subr.mxu0 %v162
        %226 = vmatpush1.msra.mxu0 %v161
        %227 = vmatprep.subr.mxu0 %v164
        %228 = vmatpush1.msra.mxu0 %v163
        %229 = vmatprep.subr.mxu0 %v166
        %230 = vmatpush1.msra.mxu0 %v165
        %231 = vmatprep.subr.mxu0 %v168
        %232 = vmatpush1.msra.mxu0 %v167
        %233 = vmatprep.subr.mxu0 %v170
        %234 = vmatpush1.msra.mxu0 %v169
        %235 = vmatprep.subr.mxu0 %v172
        %236 = vmatpush1.msra.mxu0 %v171
        %237 = vmatprep.subr.mxu0 %v174
        %238 = vmatpush1.msra.mxu0 %v173
        %239 = vmatprep.subr.mxu0 %v176
        %240 = vmatpush1.msra.mxu0 %v175
        %241 = vmatprep.subr.mxu0 %v178
        %242 = vmatpush1.msra.mxu0 %v177
        %243 = vmatprep.subr.mxu0 %v180
        %244 = vmatpush1.msra.mxu0 %v179
        %245 = vmatprep.subr.mxu0 %v182
        %246 = vmatpush1.msra.mxu0 %v181
        %247 = vmatprep.subr.mxu0 %v184
        %248 = vmatpush1.msra.mxu0 %v183
        %249 = vmatprep.subr.mxu0 %v186
        %250 = vmatpush1.msra.mxu0 %v185
        %251 = vmatprep.subr.mxu0 %v188
        %252 = vmatpush1.msra.mxu0 %v187
        %253 = vmatprep.subr.mxu0 %v190
        %254 = vmatpush1.msra.mxu0 %v189
        %255 = vmatprep.subr.mxu0 %v192
        %256 = vmatpush1.msra.mxu0 %v191
        %257 = vmatprep.subr.mxu0 %v194
        %258 = vmatpush1.msra.mxu0 %v193
        %259 = vmatprep.subr.mxu0 %v196
        %260 = vmatpush1.msra.mxu0 %v195
        %261 = vmatprep.subr.mxu0 %v198
        %262 = vmatpush1.msra.mxu0 %v197
        %263 = vmatprep.subr.mxu0 %v200
        %264 = vmatpush1.msra.mxu0 %v199
        %265 = vmatprep.subr.mxu0 %v202
        %266 = vmatpush1.msra.mxu0 %v201
        %267 = vmatprep.subr.mxu0 %v204
        %268 = vmatpush1.msra.mxu0 %v203
        %269 = vmatprep.subr.mxu0 %v206
        %270 = vmatpush1.msra.mxu0 %v205
        %271 = vmatprep.subr.mxu0 %v208
        %272 = vmatpush1.msra.mxu0 %v207
        %273 = vmatprep.subr.mxu0 %v210
        %274 = vmatpush1.msra.mxu0 %v209
        %275 = vmatprep.subr.mxu0 %v212
        %276 = vmatpush1.msra.mxu0 %v211
        %277 = vmatprep.mubr.f32.mxu0 %v118
        %278 = vmatmul.mubr.f32.gmra.mrb[0].mxu0 %v117
        %v279 = vpop.f32.mrb[0].mxu0
        %v280 = vadd.f32 0.0, %v279
        %v281 = vpop.f32.mrb[0].mxu0
        %v282 = vadd.f32 0.0, %v281
        %283 = vmatprep.mubr.f32.mxu0 %v120
        %284 = vmatmul.mubr.f32.gmra.mrb[0].mxu0 %v119
        %v285 = vpop.f32.mrb[0].mxu0
        %v286 = vadd.f32 0.0, %v285
        %v287 = vpop.f32.mrb[0].mxu0
        %v288 = vadd.f32 0.0, %v287
        %289 = vmatprep.mubr.f32.mxu0 %v122
        %290 = vmatmul.mubr.f32.gmra.mrb[0].mxu0 %v121
        %v291 = vpop.f32.mrb[0].mxu0
        %v292 = vadd.f32 0.0, %v291
        %v293 = vpop.f32.mrb[0].mxu0
        %v294 = vadd.f32 0.0, %v293
        %295 = vmatprep.mubr.f32.mxu0 %v124
        %296 = vmatmul.mubr.f32.gmra.mrb[0].mxu0 %v123
        %v297 = vpop.f32.mrb[0].mxu0
        %v298 = vadd.f32 0.0, %v297
        %v299 = vpop.f32.mrb[0].mxu0
        %v300 = vadd.f32 0.0, %v299
        %301 = vmatprep.mubr.f32.mxu0 %v126
        %302 = vmatmul.mubr.f32.gmra.mrb[0].mxu0 %v125
        %v303 = vpop.f32.mrb[0].mxu0
        %v304 = vadd.f32 0.0, %v303
        %v305 = vpop.f32.mrb[0].mxu0
        %v306 = vadd.f32 0.0, %v305
        %307 = vmatprep.mubr.f32.mxu0 %v128
        %308 = vmatmul.mubr.f32.gmra.mrb[0].mxu0 %v127
        %v309 = vpop.f32.mrb[0].mxu0
        %v310 = vadd.f32 0.0, %v309
        %v311 = vpop.f32.mrb[0].mxu0
        %v312 = vadd.f32 0.0, %v311
        %313 = vmatprep.mubr.f32.mxu0 %v130
        %314 = vmatmul.mubr.f32.gmra.mrb[0].mxu0 %v129
        %v315 = vpop.f32.mrb[0].mxu0
        %v316 = vadd.f32 0.0, %v315
        %v317 = vpop.f32.mrb[0].mxu0
        %v318 = vadd.f32 0.0, %v317
        %319 = vmatprep.mubr.f32.mxu0 %v132
        %320 = vmatmul.mubr.f32.gmra.mrb[0].mxu0 %v131
        %v321 = vpop.f32.mrb[0].mxu0
        %v322 = vadd.f32 0.0, %v321
        %v323 = vpop.f32.mrb[0].mxu0
        %v324 = vadd.f32 0.0, %v323
        %325 = vmatprep.mubr.f32.mxu0 %v134
        %326 = vmatmul.mubr.f32.gmra.mrb[0].mxu0 %v133
        %v327 = vpop.f32.mrb[0].mxu0
        %v328 = vadd.f32 0.0, %v327
        %v329 = vpop.f32.mrb[0].mxu0
        %v330 = vadd.f32 0.0, %v329
        %331 = vmatprep.mubr.f32.mxu0 %v136
        %332 = vmatmul.mubr.f32.gmra.mrb[0].mxu0 %v135
        %v333 = vpop.f32.mrb[0].mxu0
        %v334 = vadd.f32 0.0, %v333
        %v335 = vpop.f32.mrb[0].mxu0
        %v336 = vadd.f32 0.0, %v335
        %337 = vmatprep.mubr.f32.mxu0 %v138
        %338 = vmatmul.mubr.f32.gmra.mrb[0].mxu0 %v137
        %v339 = vpop.f32.mrb[0].mxu0
        %v340 = vadd.f32 0.0, %v339
        %v341 = vpop.f32.mrb[0].mxu0
        %v342 = vadd.f32 0.0, %v341
        %343 = vmatprep.mubr.f32.mxu0 %v140
        %344 = vmatmul.mubr.f32.gmra.mrb[0].mxu0 %v139
        %v345 = vpop.f32.mrb[0].mxu0
        %v346 = vadd.f32 0.0, %v345
        %v347 = vpop.f32.mrb[0].mxu0
        %v348 = vadd.f32 0.0, %v347
        %349 = vmatprep.mubr.f32.mxu0 %v142
        %350 = vmatmul.mubr.f32.gmra.mrb[0].mxu0 %v141
        %v351 = vpop.f32.mrb[0].mxu0
        %v352 = vadd.f32 0.0, %v351
        %v353 = vpop.f32.mrb[0].mxu0
        %v354 = vadd.f32 0.0, %v353
        %355 = vmatprep.mubr.f32.mxu0 %v144
        %356 = vmatmul.mubr.f32.gmra.mrb[0].mxu0 %v143
        %v357 = vpop.f32.mrb[0].mxu0
        %v358 = vadd.f32 0.0, %v357
        %v359 = vpop.f32.mrb[0].mxu0
        %v360 = vadd.f32 0.0, %v359
        %361 = vmatprep.mubr.f32.mxu0 %v146
        %362 = vmatmul.mubr.f32.gmra.mrb[0].mxu0 %v145
        %v363 = vpop.f32.mrb[0].mxu0
        %v364 = vadd.f32 0.0, %v363
        %v365 = vpop.f32.mrb[0].mxu0
        %v366 = vadd.f32 0.0, %v365
        %367 = vmatprep.mubr.f32.mxu0 %v148
        %368 = vmatmul.mubr.f32.gmra.mrb[0].mxu0 %v147
        %v369 = vpop.f32.mrb[0].mxu0
        %v370 = vadd.f32 0.0, %v369
        %v371 = vpop.f32.mrb[0].mxu0
        %v372 = vadd.f32 0.0, %v371
        %373 = vdwg.mxu0
        %374 = vst [vmem:[%s109] sm:$0xff] %v280
        %375 = vst [vmem:[%s109 + $0x8] sm:$0xff] %v282
        %376 = vst [vmem:[%s109 + $0x10] sm:$0xff] %v286
        %377 = vst [vmem:[%s109 + $0x18] sm:$0xff] %v288
        %378 = vst [vmem:[%s109 + $0x20] sm:$0xff] %v292
        %379 = vst [vmem:[%s109 + $0x28] sm:$0xff] %v294
        %380 = vst [vmem:[%s109 + $0x30] sm:$0xff] %v298
        %381 = vst [vmem:[%s109 + $0x38] sm:$0xff] %v300
        %382 = vst [vmem:[%s109 + $0x40] sm:$0xff] %v304
        %383 = vst [vmem:[%s109 + $0x48] sm:$0xff] %v306
        %384 = vst [vmem:[%s109 + $0x50] sm:$0xff] %v310
        %385 = vst [vmem:[%s109 + $0x58] sm:$0xff] %v312
        %386 = vst [vmem:[%s109 + $0x60] sm:$0xff] %v316
        %387 = vst [vmem:[%s109 + $0x68] sm:$0xff] %v318
        %388 = vst [vmem:[%s109 + $0x70] sm:$0xff] %v322
        %389 = vst [vmem:[%s109 + $0x78] sm:$0xff] %v324
        %390 = vst [vmem:[%s109 + $0x80] sm:$0xff] %v328
        %391 = vst [vmem:[%s109 + $0x88] sm:$0xff] %v330
        %392 = vst [vmem:[%s109 + $0x90] sm:$0xff] %v334
        %393 = vst [vmem:[%s109 + $0x98] sm:$0xff] %v336
        %394 = vst [vmem:[%s109 + $0xa0] sm:$0xff] %v340
        %395 = vst [vmem:[%s109 + $0xa8] sm:$0xff] %v342
        %396 = vst [vmem:[%s109 + $0xb0] sm:$0xff] %v346
        %397 = vst [vmem:[%s109 + $0xb8] sm:$0xff] %v348
        %398 = vst [vmem:[%s109 + $0xc0] sm:$0xff] %v352
        %399 = vst [vmem:[%s109 + $0xc8] sm:$0xff] %v354
        %400 = vst [vmem:[%s109 + $0xd0] sm:$0xff] %v358
        %401 = vst [vmem:[%s109 + $0xd8] sm:$0xff] %v360
        %402 = vst [vmem:[%s109 + $0xe0] sm:$0xff] %v364
        %403 = vst [vmem:[%s109 + $0xe8] sm:$0xff] %v366
        %404 = vst [vmem:[%s109 + $0xf0] sm:$0xff] %v370
        %405 = vst [vmem:[%s109 + $0xf8] sm:$0xff] %v372
        %s406 = sand.u32 %s45, 1
        %s407 = scalar_lea.sflag [#allocation4], %s406
        %s408 = sand.u32 %s45, 1
        %s409 = smul.addr %s408, 256
        %s410 = scalar_lea.vmem [#allocation5], %s409
        // Predicated region
        $region29: #{tpu_custom_call.1} parent=23 // pred_check
          %p411 = pneg %p55
        $region30: #{tpu_custom_call.1} parent=23 // pred_check_branch
          %413 = sbr.rel (%p411) target = $region32
        $region31: #{tpu_custom_call.1} parent=23 // pred_region
          %s414 = smul.u32 16, %s16
          %s416 = ssub.s32 4096, 4096
          %417 = vsyncadd %s407, %s416
          %s418 = smul.addr %s414, 2
          %s419 = smul.addr %s418, 128
          %s420 = scalar_lea.hbm %s1, %s419
          %s421 = sshll.u32 %s410, 4
          %s422 = int_to_ptr.vmem [resolvable:$true] %s421
          %427 = dma.vmem_to_hbm [thread:$0]  %s422, 4096, %s420, %s407, 256, 256, 16
        $region32: #{tpu_custom_call.1} parent=23 // pred_fallthru
          _
      $region24: #{tpu_custom_call.1} parent=5 // pred_fallthru
        _
      %p428 = scmp.le.s32.totalorder 2, %s11
      // Predicated region
      $region33: #{tpu_custom_call.1} parent=5 // pred_check
        %p429 = pneg %p428
      $region34: #{tpu_custom_call.1} parent=5 // pred_check_branch
        %431 = sbr.rel (%p429) target = $region36
      $region35: #{tpu_custom_call.1} parent=5 // pred_region
        %s432 = ssub.s32 %s11, 2
        // Predicated region
        $region37: #{tpu_custom_call.1} parent=35 // pred_check
          %p433 = pneg %p61
        $region38: #{tpu_custom_call.1} parent=35 // pred_check_branch
          %435 = sbr.rel (%p433) target = $region40
        $region39: #{tpu_custom_call.1} parent=35 // pred_region
          %s436 = sand.u32 %s46, 1
          %s437 = scalar_lea.sflag [#allocation4], %s436
          %s438 = sand.u32 %s46, 1
          %s439 = smul.addr %s438, 256
          %s440 = scalar_lea.vmem [#allocation5], %s439
          %441 = dma.done %s437, 4096
        $region40: #{tpu_custom_call.1} parent=35 // pred_fallthru
          _
      $region36: #{tpu_custom_call.1} parent=5 // pred_fallthru
        _
    $region6: #{tpu_custom_call.1} parent=1 // loop_footer
      %s15 = sadd.s32 1, %s11
    $region7: #{tpu_custom_call.1} parent=1 // loop_footer_branch
      %10 = sbr.rel target = $region3
    $region8: #{tpu_custom_call.1} parent=1 // loop_exit
      _
    %442 = vsyncpa [#allocation3], 1
    %s443 = scalar_lea.sflag [#allocation3], 1
    %444 = vsyncpa %s443, 1
    %445 = vsyncpa [#allocation4], 1
    %s446 = scalar_lea.sflag [#allocation4], 1
    %447 = vsyncpa %s446, 1

</llo_original>
